<compile_context>
chip_gen: v5e
topology: v5e:2x2
jax: 0.10.0
libtpu: 0.0.40
codegen_flags: <defaults>
</compile_context>

<pallas_src>
import jax
import jax.numpy as jnp
from jax import lax
from jax.experimental import pallas as pl
from jax.experimental.pallas import tpu as pltpu

_VMEM_LIMIT_BYTES = 48 * 1024 * 1024


def _round_up(v, m):
    return (v + m - 1) // m * m


def _cdiv(a, b):
    return (a + b - 1) // b


# ----------------------------------------------------------------------------
# Pass 1: per-segment feature sums  seg_sum[b, :] = sum_{rows in segment b} x.
# Row->segment mask built in-kernel; masked sum on the MXU as a
# [bp, tm] @ [tm, c] matmul accumulated into a resident f32 block.
# ----------------------------------------------------------------------------
def _segment_sum_kernel(starts_ref, ends_ref, x_ref, sum_ref):
    @pl.when(pl.program_id(1) == 0)
    def _():
        sum_ref[...] = jnp.zeros_like(sum_ref)

    tm = x_ref.shape[0]
    bp = sum_ref.shape[0]
    tile = pl.program_id(0) * pl.num_programs(1) + pl.program_id(1)
    rows = tile * tm + lax.broadcasted_iota(jnp.int32, (bp, tm), 1)
    mask = ((rows >= starts_ref[...]) & (rows < ends_ref[...])).astype(x_ref.dtype)
    sum_ref[...] += jnp.dot(mask, x_ref[...], preferred_element_type=jnp.float32)


# ----------------------------------------------------------------------------
# Pass 2: per-row-tile fused linear1 + LayerNorm + ReLU.
#   h   = x_tile @ W1a^T                      (MXU)
#       + seg_contrib[segment(row)]           (VPU select, offsets from SMEM)
#   out = relu(LayerNorm(h))                  (VPU, f32)
# ----------------------------------------------------------------------------
def _fused_row_kernel(starts_ref, ends_ref, x_ref, w1at_ref, segc_ref,
                      gamma_ref, beta_ref, out_ref):
    tm, c = out_ref.shape
    bp = segc_ref.shape[0]

    h = jnp.dot(x_ref[...], w1at_ref[...], preferred_element_type=jnp.float32)

    # Per-row segment contribution via an unrolled VPU select against the
    # resident (bp, c) table.  bp (padded #segments) is small for this model;
    # for very large batch counts a masked-matmul fallback would be preferable.
    rows = (pl.program_id(0) * tm
            + lax.broadcasted_iota(jnp.int32, (tm, 1), 0))
    segc = segc_ref[...]
    contrib = jnp.zeros((tm, c), jnp.float32)
    for s in range(bp):
        in_seg = (rows >= starts_ref[s]) & (rows < ends_ref[s])
        contrib = jnp.where(in_seg, segc[s:s + 1, :], contrib)
    h = h + contrib

    # LayerNorm (eps = 1e-5, PyTorch default) + ReLU, all in f32 on the VPU.
    mu = jnp.mean(h, axis=-1, keepdims=True)
    var = jnp.mean((h - mu) ** 2, axis=-1, keepdims=True)
    normed = (h - mu) * lax.rsqrt(var + 1e-5)
    out = jnp.maximum(normed * gamma_ref[...] + beta_ref[...], 0.0)
    out_ref[...] = out.astype(out_ref.dtype)


def transition_up(x, o, w1, b1, gamma, beta, w2, b2, *,
                  block_rows=1024, compute_dtype=jnp.bfloat16,
                  out_dtype=None, pass1_partitions=2):
    """pxo1=(p, x, o) branch of TransitionUp.forward (p unused).

    x: [N, C] features, o: [B] cumulative batch offsets.  Assumes o[-1] == N;
    empty segments get mean := 0 (reference would divide by zero).
    Matmuls run in `compute_dtype` (bf16 fast path, f32 exact) with f32
    accumulation; LayerNorm / ReLU always f32; the output is stored as
    `out_dtype` (defaults to x.dtype).
    """
    n, c = x.shape
    b = o.shape[0]
    out_dtype = x.dtype if out_dtype is None else out_dtype

    o = o.astype(jnp.int32)
    starts = jnp.concatenate([jnp.zeros((1,), jnp.int32), o[:-1]])
    counts = (o - starts).astype(jnp.float32)

    # Padded sizes: segments padded to a sublane multiple; rows padded to a
    # whole number of row tiles (and to `pass1_partitions` tile groups).
    bp = max(8, _round_up(b, 8))
    tm = min(block_rows, _round_up(n, 8))
    n_tiles = _cdiv(n, tm)
    p1 = max(1, min(pass1_partitions, n_tiles))
    tiles_per_part = _cdiv(n_tiles, p1)
    n_tiles = tiles_per_part * p1
    n_pad = n_tiles * tm

    # x in compute dtype; pad / cast only when actually needed.
    x_c = x if x.dtype == compute_dtype else x.astype(compute_dtype)
    if n_pad != n:
        x_c = jnp.pad(x_c, ((0, n_pad - n), (0, 0)))

    starts_p = jnp.pad(starts, (0, bp - b))        # padded segments: [0, 0) = empty
    ends_p = jnp.pad(o, (0, bp - b))
    starts_col = starts_p.reshape(bp, 1)
    ends_col = ends_p.reshape(bp, 1)

    # -------- Pass 1: segment sums (parallel partitions x serial row tiles) --
    seg_part = pl.pallas_call(
        _segment_sum_kernel,
        out_shape=jax.ShapeDtypeStruct((p1, bp, c), jnp.float32),
        grid=(p1, tiles_per_part),
        in_specs=[pl.BlockSpec((bp, 1), lambda p, j: (0, 0)),
                  pl.BlockSpec((bp, 1), lambda p, j: (0, 0)),
                  pl.BlockSpec((tm, c),
                               lambda p, j, tpp=tiles_per_part: (p * tpp + j, 0))],
        out_specs=pl.BlockSpec((None, bp, c), lambda p, j: (p, 0, 0)),
        compiler_params=pltpu.CompilerParams(
            dimension_semantics=("parallel", "arbitrary"),
            vmem_limit_bytes=_VMEM_LIMIT_BYTES),
    )(starts_col, ends_col, x_c)
    seg_sum = seg_part.sum(axis=0)                                  # [bp, c] f32

    # -------- Tiny per-segment math ([bp, c] sized) in plain XLA -------------
    cnt_safe = jnp.maximum(jnp.pad(counts, (0, bp - b)), 1.0)[:, None]   # no /0
    mean = seg_sum / cnt_safe
    w1f = jnp.asarray(w1, jnp.float32)
    g = jnp.maximum(jnp.dot(mean, jnp.asarray(w2, jnp.float32).T)
                    + jnp.asarray(b2, jnp.float32)[None, :], 0.0)    # linear2+ReLU
    # Fold the broadcast half of linear1 (and its bias) into one per-segment
    # row contribution: every row of segment b receives seg_contrib[b].
    seg_contrib = (jnp.dot(g, w1f[:, c:].T)
                   + jnp.asarray(b1, jnp.float32)[None, :])          # [bp, c] f32
    w1at = w1f[:, :c].T.astype(compute_dtype)                        # [c, c]
    gamma_r = jnp.asarray(gamma, jnp.float32).reshape(1, c)
    beta_r = jnp.asarray(beta, jnp.float32).reshape(1, c)

    # -------- Pass 2: row-parallel fused linear1 + LayerNorm + ReLU ----------
    out = pl.pallas_call(
        _fused_row_kernel,
        out_shape=jax.ShapeDtypeStruct((n_pad, c), out_dtype),
        grid_spec=pltpu.PrefetchScalarGridSpec(
            num_scalar_prefetch=2,                   # starts, ends -> SMEM
            grid=(n_tiles,),
            in_specs=[pl.BlockSpec((tm, c), lambda i, st, en: (i, 0)),
                      pl.BlockSpec((c, c), lambda i, st, en: (0, 0)),
                      pl.BlockSpec((bp, c), lambda i, st, en: (0, 0)),
                      pl.BlockSpec((1, c), lambda i, st, en: (0, 0)),
                      pl.BlockSpec((1, c), lambda i, st, en: (0, 0))],
            out_specs=pl.BlockSpec((tm, c), lambda i, st, en: (i, 0))),
        compiler_params=pltpu.CompilerParams(
            dimension_semantics=("parallel",),
            vmem_limit_bytes=_VMEM_LIMIT_BYTES),
    )(starts_p, ends_p, x_c, w1at, seg_contrib, gamma_r, beta_r)

    return out[:n]


def transition_up_ref(x, o, w1, b1, gamma, beta, w2, b2):
    """Pure-JAX f32 reference matching the PyTorch forward (pxo2=None)."""
    pieces = []
    for i in range(o.shape[0]):
        s = 0 if i == 0 else int(o[i - 1])
        e = int(o[i])
        cnt = e - s
        x_b = x[s:e, :]
        g = jnp.maximum(jnp.dot(x_b.sum(0, keepdims=True) / cnt, w2.T) + b2, 0.0)
        pieces.append(jnp.concatenate([x_b, jnp.tile(g, (cnt, 1))], axis=1))
    cat = jnp.concatenate(pieces, axis=0)
    h = jnp.dot(cat, w1.T) + b1
    mu = jnp.mean(h, axis=-1, keepdims=True)
    var = jnp.mean((h - mu) ** 2, axis=-1, keepdims=True)
    normed = (h - mu) / jnp.sqrt(var + 1e-5)
    return jnp.maximum(normed * gamma + beta, 0.0)


# TODO(synk): the pxo2 != None branch (pointops.f_interpolation kNN interp),
# pointops.queryandgroup, grid_sampling (np.unique), LocalPPFTransformer and
# GeometricTransformer have no clean Pallas equivalent here and are not
# implemented; this kernel covers TransitionUp's pxo2=None forward path.

if __name__ == "__main__":
    key = jax.random.PRNGKey(0)
    in_planes = 128                     # lane-dense channel width (model planes[1])
    n_points = 200                      # total points across the batch
    o = jnp.array([88, 200], dtype=jnp.int32)   # batch offsets (2 segments)

    ks = jax.random.split(key, 5)
    x = jax.random.normal(ks[0], (n_points, in_planes), jnp.float32)
    # linear1: Linear(2*in_planes, in_planes) + LayerNorm(in_planes) + ReLU
    w1 = jax.random.normal(ks[1], (in_planes, 2 * in_planes), jnp.float32) * 0.1
    b1 = jax.random.normal(ks[2], (in_planes,), jnp.float32) * 0.1
    gamma = jnp.ones((in_planes,), jnp.float32)
    beta = jnp.zeros((in_planes,), jnp.float32)
    # linear2: Linear(in_planes, in_planes) + ReLU
    w2 = jax.random.normal(ks[3], (in_planes, in_planes), jnp.float32) * 0.1
    b2 = jax.random.normal(ks[4], (in_planes,), jnp.float32) * 0.1

    ref = transition_up_ref(x, o, w1, b1, gamma, beta, w2, b2)

    # Exact path: f32 matmuls, small tiles to exercise the multi-tile grid and
    # the 2-way pass-1 partitioning.
    out_f32 = transition_up(x, o, w1, b1, gamma, beta, w2, b2,
                            block_rows=128, compute_dtype=jnp.float32,
                            out_dtype=jnp.float32, pass1_partitions=2)
    out_f32 = jax.block_until_ready(out_f32)
    assert out_f32.shape == ref.shape
    assert jnp.allclose(out_f32, ref, atol=1e-4, rtol=1e-4), "f32 mismatch vs reference"

    # Fast production path: bf16 MXU matmuls, bf16 output, default 1024-row tiles.
    out_bf16 = transition_up(x, o, w1, b1, gamma, beta, w2, b2,
                             compute_dtype=jnp.bfloat16, out_dtype=jnp.bfloat16)
    out_bf16 = jax.block_until_ready(out_bf16)
    assert jnp.allclose(out_bf16.astype(jnp.float32), ref, atol=5e-2, rtol=5e-2), \
        "bf16 mismatch vs reference"

    print("KERNEL_OK")
</pallas_src>

<mosaic_0001>
module attributes {stable_mosaic.version = 11 : i64} {
  func.func @_segment_sum_kernel(%arg0: i32, %arg1: i32, %arg2: memref<8x1xi32, #tpu.memory_space<vmem>>, %arg3: memref<8x1xi32, #tpu.memory_space<vmem>>, %arg4: memref<128x128xf32, #tpu.memory_space<vmem>>, %arg5: memref<1x8x128xf32, #tpu.memory_space<vmem>>) attributes {dimension_semantics = [#tpu.dimension_semantics<parallel>, #tpu.dimension_semantics<arbitrary>], iteration_bounds = array<i64: 2, 1>, scalar_prefetch = 0 : i64, scratch_operands = 0 : i64, tpu.core_type = #tpu.core_type<tc>, window_params = [{pipeline_mode = #tpu.pipeline_mode<synchronous>, transform_indices = @transform_0, window_bounds = array<i64: 8, 1>}, {pipeline_mode = #tpu.pipeline_mode<synchronous>, transform_indices = @transform_1, window_bounds = array<i64: 8, 1>}, {transform_indices = @transform_2, window_bounds = array<i64: 128, 128>}, {transform_indices = @transform_3, window_bounds = array<i64: 1, 8, 128>}]} {
    %c0_i32 = arith.constant 0 : i32
    %0 = arith.cmpi eq, %arg1, %c0_i32 : i32
    %1 = arith.extui %0 : i1 to i32
    %c0_i32_0 = arith.constant 0 : i32
    %2 = arith.cmpi ne, %1, %c0_i32_0 : i32
    scf.if %2 {
      %cst_12 = arith.constant 0.000000e+00 : f32
      %26 = vector.broadcast %cst_12 : f32 to vector<8x128xf32>
      %c0_13 = arith.constant 0 : index
      %c0_14 = arith.constant 0 : index
      %c0_15 = arith.constant 0 : index
      %27 = vector.load %arg5[%c0_13, %c0_14, %c0_15] : memref<1x8x128xf32, #tpu.memory_space<vmem>>, vector<1x8x128xf32>
      %28 = vector.shape_cast %27 : vector<1x8x128xf32> to vector<8x128xf32>
      %29 = vector.shape_cast %26 : vector<8x128xf32> to vector<1x8x128xf32>
      tpu.vector_store %arg5[%c0_13, %c0_14, %c0_15], %29 {strides = array<i32>} : memref<1x8x128xf32, #tpu.memory_space<vmem>>, vector<1x8x128xf32>,
    } else {
    }
    %c1_i32 = arith.constant 1 : i32
    %3 = arith.muli %arg0, %c1_i32 : i32
    %4 = arith.addi %3, %arg1 : i32
    %c128_i32 = arith.constant 128 : i32
    %5 = arith.muli %4, %c128_i32 : i32
    %6 = tpu.iota {dimensions = array<i32: 1>} : vector<8x128xi32>
    %7 = vector.broadcast %5 : i32 to vector<8x128xi32>
    %8 = arith.addi %7, %6 : vector<8x128xi32>
    %c0 = arith.constant 0 : index
    %c0_1 = arith.constant 0 : index
    %9 = vector.load %arg2[%c0, %c0_1] : memref<8x1xi32, #tpu.memory_space<vmem>>, vector<8x1xi32>
    %10 = vector.broadcast %9 : vector<8x1xi32> to vector<8x128xi32>
    %11 = arith.cmpi sge, %8, %10 : vector<8x128xi32>
    %c0_2 = arith.constant 0 : index
    %c0_3 = arith.constant 0 : index
    %12 = vector.load %arg3[%c0_2, %c0_3] : memref<8x1xi32, #tpu.memory_space<vmem>>, vector<8x1xi32>
    %13 = vector.broadcast %12 : vector<8x1xi32> to vector<8x128xi32>
    %14 = arith.cmpi slt, %8, %13 : vector<8x128xi32>
    %15 = arith.andi %11, %14 : vector<8x128xi1>
    %16 = arith.extui %15 : vector<8x128xi1> to vector<8x128xi32>
    %17 = arith.sitofp %16 : vector<8x128xi32> to vector<8x128xf32>
    %c0_4 = arith.constant 0 : index
    %c0_5 = arith.constant 0 : index
    %c0_6 = arith.constant 0 : index
    %18 = vector.load %arg5[%c0_4, %c0_5, %c0_6] : memref<1x8x128xf32, #tpu.memory_space<vmem>>, vector<1x8x128xf32>
    %19 = vector.shape_cast %18 : vector<1x8x128xf32> to vector<8x128xf32>
    %c0_7 = arith.constant 0 : index
    %c0_8 = arith.constant 0 : index
    %20 = vector.load %arg4[%c0_7, %c0_8] : memref<128x128xf32, #tpu.memory_space<vmem>>, vector<128x128xf32>
    %cst = arith.constant dense<0.000000e+00> : vector<8x128xf32>
    %21 = tpu.matmul %17, %20, %cst {dimension_numbers = #tpu.dot_dimension_numbers<[1], [0], [0], [1], [0, 0, 1, 1], [], []>} : vector<8x128xf32>, vector<128x128xf32>, vector<8x128xf32> -> vector<8x128xf32>
    %22 = arith.addf %19, %21 : vector<8x128xf32>
    %c0_9 = arith.constant 0 : index
    %c0_10 = arith.constant 0 : index
    %c0_11 = arith.constant 0 : index
    %23 = vector.load %arg5[%c0_9, %c0_10, %c0_11] : memref<1x8x128xf32, #tpu.memory_space<vmem>>, vector<1x8x128xf32>
    %24 = vector.shape_cast %23 : vector<1x8x128xf32> to vector<8x128xf32>
    %25 = vector.shape_cast %22 : vector<8x128xf32> to vector<1x8x128xf32>
    tpu.vector_store %arg5[%c0_9, %c0_10, %c0_11], %25 {strides = array<i32>} : memref<1x8x128xf32, #tpu.memory_space<vmem>>, vector<1x8x128xf32>,
    return
  }
  func.func @transform_0(%arg0: i32, %arg1: i32) -> (i32, i32) {
    %c0_i32 = arith.constant 0 : i32
    %c0_i32_0 = arith.constant 0 : i32
    %c0_i32_1 = arith.constant 0 : i32
    return %c0_i32, %c0_i32_0 : i32, i32
  }
  func.func @transform_1(%arg0: i32, %arg1: i32) -> (i32, i32) {
    %c0_i32 = arith.constant 0 : i32
    %c0_i32_0 = arith.constant 0 : i32
    %c0_i32_1 = arith.constant 0 : i32
    return %c0_i32, %c0_i32_0 : i32, i32
  }
  func.func @transform_2(%arg0: i32, %arg1: i32) -> (i32, i32) {
    %c1_i32 = arith.constant 1 : i32
    %0 = arith.muli %arg0, %c1_i32 : i32
    %1 = arith.addi %0, %arg1 : i32
    %c0_i32 = arith.constant 0 : i32
    %c0_i32_0 = arith.constant 0 : i32
    return %1, %c0_i32 : i32, i32
  }
  func.func @transform_3(%arg0: i32, %arg1: i32) -> (i32, i32, i32) {
    %c0_i32 = arith.constant 0 : i32
    %c0_i32_0 = arith.constant 0 : i32
    %c0_i32_1 = arith.constant 0 : i32
    return %arg0, %c0_i32, %c0_i32_0 : i32, i32, i32
  }
}

</mosaic_0001>

<llo_original>
// kernel: tpu_custom_call.1
$region0: #{tpu_custom_call.1}
  #allocation0 [shape = 'u32[]', space=smem, size = 0x4, offset = 0x4, fixed_abs, tag = 'smem constant byte address 0x4 - core index']
  #allocation1 [shape = 'u32[72,128]{1,0:T(1,128)}', space=vmem, size = 0x9000, scoped, tag = 'internal scratch']
  %s0 = inlined_call_operand.vmem [shape: s32[8,1], index: 0, kind: input, shape index: {}]
  %s1 = inlined_call_operand.vmem [shape: s32[8,1], index: 1, kind: input, shape index: {}]
  %s2 = inlined_call_operand.hbm [shape: f32[256,128], index: 2, kind: input, shape index: {}]
  %s3 = inlined_call_operand.hbm [shape: f32[2,8,128], index: 3, kind: output, shape index: {}]
  %s4 = sld [smem:[#allocation0]]
  $region53: #{tpu_custom_call.1} parent=0
    _
  %s6 = ssub.s32 1, %s4
  %s7 = scalar_select 0, %s6, %s4
  $region1: #{tpu_custom_call.1} parent=0
    #allocation2 [shape = 'u8[131072]{0}', space=vmem, size = 0x20000, scoped, tag = 'input window, operand 2']
    #allocation3 [shape = 's32[2]{0}', space=sflag, size = 0x8, scoped, tag = 'scoped memory for tpu_custom_call.1']
    #allocation4 [shape = 's32[2]{0}', space=sflag, size = 0x8, scoped, tag = 'scoped memory for tpu_custom_call.1']
    #allocation5 [shape = 'u8[8192]{0}', space=vmem, size = 0x2000, scoped, tag = 'output window, operand 0']
    %8 = vsyncpa [#allocation3], 0
    %s9 = scalar_lea.sflag [#allocation3], 1
    %10 = vsyncpa %s9, 0
    %11 = vsyncpa [#allocation4], 0
    %s12 = scalar_lea.sflag [#allocation4], 1
    %13 = vsyncpa %s12, 0
    loop: start=0, step=1, limit=4
    $region2: #{tpu_custom_call.1} parent=1 // loop_pre_header
      _
    $region3: #{tpu_custom_call.1} parent=1 // loop_header
      %s15 = sphi 0, %s19
      %p16 = scmp.ge.s32.totalorder %s15, 4
      %s22 = sphi 0, %s34
      %s23 = sphi 0, %s30
      %s24 = sphi 0, %s22
      %s25 = sphi 0, %s23
      %s26 = sphi 0, %s24
      %s27 = sphi 0, %s25
      %s35 = sphi 0, %s35
      %s37 = sphi 0, %s35
      %s38 = sphi 0, %s37
      %s52 = sphi 0, %s38
      %s56 = sphi 0, %s56
      %s58 = sphi 0, %s56
      %s59 = sphi 0, %s58
      %s73 = sphi 0, %s59
      %s81 = sphi 0, %s83
      %s84 = sphi 0, %s81
      %s85 = sphi 0, %s84
      %s101 = sphi 0, %s85
      %s107 = sphi 0, %s109
      %s110 = sphi 0, %s107
      %s111 = sphi 0, %s110
      %s127 = sphi 0, %s111
    $region4: #{tpu_custom_call.1} parent=1 // loop_header_branch
      %18 = sbr.rel (%p16) target = $region8
    $region5: #{tpu_custom_call.1} parent=1 // loop_body
      %s20 = ssub.s32 %s15, 1
      %s21 = ssub.s32 %s15, 2
      %s28 = sadd.s32 1, %s23
      %p29 = scmp.ge.s32.totalorder %s28, 1
      %s30 = scalar_select %p29, 0, %s28
      %s31 = sadd.s32 1, %s22
      %s32 = scalar_select %p29, %s31, %s22
      %p33 = scmp.ge.s32.totalorder %s32, 2
      %s34 = scalar_select %p33, 0, %s32
      %s36 = sadd.s32 %s35, 1
      %p39 = scmp.eq.s32.totalorder %s15, 1
      %p40 = scmp.ne.s32.totalorder %s35, %s37
      %p41 = scmp.eq.s32.totalorder %s15, 0
      %p42 = por %p40, %p41
      %p43 = scmp.ne.s32.totalorder %s35, %s37
      %p44 = scmp.eq.s32.totalorder %s20, 1
      %p45 = por %p43, %p44
      %p46 = scmp.ne.s32.totalorder %s37, %s38
      %p47 = scmp.eq.s32.totalorder %s20, 0
      %p48 = por %p46, %p47
      %p49 = scmp.ne.s32.totalorder %s37, %s38
      %p50 = scmp.eq.s32.totalorder %s21, 1
      %p51 = por %p49, %p50
      %p53 = scmp.ne.s32.totalorder %s38, %s52
      %p54 = scmp.eq.s32.totalorder %s21, 0
      %p55 = por %p53, %p54
      %s57 = sadd.s32 %s56, 1
      %p60 = scmp.eq.s32.totalorder %s15, 1
      %p61 = scmp.ne.s32.totalorder %s56, %s58
      %p62 = scmp.eq.s32.totalorder %s15, 0
      %p63 = por %p61, %p62
      %p64 = scmp.ne.s32.totalorder %s56, %s58
      %p65 = scmp.eq.s32.totalorder %s20, 1
      %p66 = por %p64, %p65
      %p67 = scmp.ne.s32.totalorder %s58, %s59
      %p68 = scmp.eq.s32.totalorder %s20, 0
      %p69 = por %p67, %p68
      %p70 = scmp.ne.s32.totalorder %s58, %s59
      %p71 = scmp.eq.s32.totalorder %s21, 1
      %p72 = por %p70, %p71
      %p74 = scmp.ne.s32.totalorder %s59, %s73
      %p75 = scmp.eq.s32.totalorder %s21, 0
      %p76 = por %p74, %p75
      %s77 = sadd.s32 %s22, %s23
      %s78 = sadd.s32 %s34, %s30
      %s79 = ssub.s32 %s77, %s78
      %p80 = scmp.eq.s32.totalorder %s79, 0
      %s82 = sadd.s32 %s81, 1
      %s83 = scalar_select %p80, %s81, %s82
      %p86 = pneg %p80
      %p87 = scmp.eq.s32.totalorder %s15, 1
      %p88 = por %p86, %p87
      %p89 = scmp.ne.s32.totalorder %s81, %s84
      %p90 = scmp.eq.s32.totalorder %s15, 0
      %p91 = por %p89, %p90
      %p92 = scmp.ne.s32.totalorder %s81, %s84
      %p93 = scmp.eq.s32.totalorder %s20, 1
      %p94 = por %p92, %p93
      %p95 = scmp.ne.s32.totalorder %s84, %s85
      %p96 = scmp.eq.s32.totalorder %s20, 0
      %p97 = por %p95, %p96
      %p98 = scmp.ne.s32.totalorder %s84, %s85
      %p99 = scmp.eq.s32.totalorder %s21, 1
      %p100 = por %p98, %p99
      %p102 = scmp.ne.s32.totalorder %s85, %s101
      %p103 = scmp.eq.s32.totalorder %s21, 0
      %p104 = por %p102, %p103
      %s105 = ssub.s32 %s22, %s34
      %p106 = scmp.eq.s32.totalorder %s105, 0
      %s108 = sadd.s32 %s107, 1
      %s109 = scalar_select %p106, %s107, %s108
      %p112 = pneg %p106
      %p113 = scmp.eq.s32.totalorder %s15, 1
      %p114 = por %p112, %p113
      %p115 = scmp.ne.s32.totalorder %s107, %s110
      %p116 = scmp.eq.s32.totalorder %s15, 0
      %p117 = por %p115, %p116
      %p118 = scmp.ne.s32.totalorder %s107, %s110
      %p119 = scmp.eq.s32.totalorder %s20, 1
      %p120 = por %p118, %p119
      %p121 = scmp.ne.s32.totalorder %s110, %s111
      %p122 = scmp.eq.s32.totalorder %s20, 0
      %p123 = por %p121, %p122
      %p124 = scmp.ne.s32.totalorder %s110, %s111
      %p125 = scmp.eq.s32.totalorder %s21, 1
      %p126 = por %p124, %p125
      %p128 = scmp.ne.s32.totalorder %s111, %s127
      %p129 = scmp.eq.s32.totalorder %s21, 0
      %p130 = por %p128, %p129
      %p131 = scmp.le.s32.totalorder 1, %s15
      %p132 = scmp.lt.s32.totalorder %s15, 3
      %p133 = pnand %p131, %p132
      %p134 = pneg %p133
      // Predicated region
      $region9: #{tpu_custom_call.1} parent=5 // pred_check
        _
      $region10: #{tpu_custom_call.1} parent=5 // pred_check_branch
        %136 = sbr.rel (%p133) target = $region12
      $region11: #{tpu_custom_call.1} parent=5 // pred_region
        %s137 = ssub.s32 %s15, 1
        // Predicated region
        $region13: #{tpu_custom_call.1} parent=11 // pred_check
          %p138 = pneg %p48
        $region14: #{tpu_custom_call.1} parent=11 // pred_check_branch
          %140 = sbr.rel (%p138) target = $region16
        $region15: #{tpu_custom_call.1} parent=11 // pred_region
          _
        $region16: #{tpu_custom_call.1} parent=11 // pred_fallthru
          _
        // Predicated region
        $region17: #{tpu_custom_call.1} parent=11 // pred_check
          %p141 = pneg %p69
        $region18: #{tpu_custom_call.1} parent=11 // pred_check_branch
          %143 = sbr.rel (%p141) target = $region20
        $region19: #{tpu_custom_call.1} parent=11 // pred_region
          _
        $region20: #{tpu_custom_call.1} parent=11 // pred_fallthru
          _
      $region12: #{tpu_custom_call.1} parent=5 // pred_fallthru
        _
      %p144 = scmp.lt.s32.totalorder %s15, 2
      // Predicated region
      $region21: #{tpu_custom_call.1} parent=5 // pred_check
        %p145 = pneg %p144
      $region22: #{tpu_custom_call.1} parent=5 // pred_check_branch
        %147 = sbr.rel (%p145) target = $region24
      $region23: #{tpu_custom_call.1} parent=5 // pred_region
        // Predicated region
        $region25: #{tpu_custom_call.1} parent=23 // pred_check
          %p148 = pneg %p91
        $region26: #{tpu_custom_call.1} parent=23 // pred_check_branch
          %150 = sbr.rel (%p148) target = $region28
        $region27: #{tpu_custom_call.1} parent=23 // pred_region
          %s151 = sand.u32 %s81, 1
          %s152 = scalar_lea.sflag [#allocation3], %s151
          %s153 = sand.u32 %s81, 1
          %s154 = smul.addr %s153, 128
          %s155 = scalar_lea.vmem [#allocation2], %s154
          %s156 = sadd.s32 %s22, %s23
          %s157 = smul.u32 16, %s156
          %159 = vsyncadd %s152, 0
          %s160 = smul.addr %s157, 8
          %s161 = scalar_lea.hbm %s2, %s160
          %s162 = sshll.u32 %s161, 4
          %s163 = int_to_ptr.hbm [resolvable:$true] %s162
          %s164 = sshll.u32 %s155, 4
          %s165 = int_to_ptr.vmem [resolvable:$true] %s164
          %170 = dma.hbm_to_vmem [thread:$0]  %s163, 2048, %s165, %s152, 128, 128, 8
        $region28: #{tpu_custom_call.1} parent=23 // pred_fallthru
          _
      $region24: #{tpu_custom_call.1} parent=5 // pred_fallthru
        _
      %p171 = scmp.le.s32.totalorder 1, %s15
      %p172 = scmp.lt.s32.totalorder %s15, 3
      %p173 = pnand %p171, %p172
      %p174 = pneg %p173
      // Predicated region
      $region29: #{tpu_custom_call.1} parent=5 // pred_check
        _
      $region30: #{tpu_custom_call.1} parent=5 // pred_check_branch
        %176 = sbr.rel (%p173) target = $region32
      $region31: #{tpu_custom_call.1} parent=5 // pred_region
        %s177 = ssub.s32 %s15, 1
        %s178 = sand.u32 %s84, 1
        %s179 = scalar_lea.sflag [#allocation3], %s178
        %s180 = sand.u32 %s84, 1
        %s181 = smul.addr %s180, 128
        %s182 = scalar_lea.vmem [#allocation2], %s181
        // Predicated region
        $region33: #{tpu_custom_call.1} parent=31 // pred_check
          %p183 = pneg %p97
        $region34: #{tpu_custom_call.1} parent=31 // pred_check_branch
          %185 = sbr.rel (%p183) target = $region36
        $region35: #{tpu_custom_call.1} parent=31 // pred_region
          %187 = dma.done %s179, 2048
        $region36: #{tpu_custom_call.1} parent=31 // pred_fallthru
          _
        %p188 = pneg %p48
        %p189 = pneg %p45
        %p190 = pneg %p69
        %p191 = pneg %p66
        %s192 = sand.u32 %s84, 1
        %s193 = scalar_lea.sflag [#allocation3], %s192
        %s194 = sand.u32 %s84, 1
        %s195 = smul.addr %s194, 128
        %s196 = scalar_lea.vmem [#allocation2], %s195
        %p197 = pneg %p97
        %p198 = pneg %p94
        %p199 = pneg %p123
        %p200 = pneg %p120
        %s201 = sand.u32 %s110, 1
        %s202 = scalar_lea.sflag [#allocation4], %s201
        %s203 = sand.u32 %s110, 1
        %s204 = smul.addr %s203, 8
        %s205 = scalar_lea.vmem [#allocation5], %s204
        %s206 = sadd.s32 %s24, %s25
        %s207 = smul.u32 16, %s206
        %p208 = scmp.eq.s32.totalorder %s25, 0
        // Predicated region
        $region37: #{tpu_custom_call.1} parent=31 // pred_check
          %p209 = pneg %p208
        $region38: #{tpu_custom_call.1} parent=31 // pred_check_branch
          %211 = sbr.rel (%p209) target = $region40
        $region39: #{tpu_custom_call.1} parent=31 // pred_region
          %212 = vst [vmem:[%s205] sm:$0xff] 0.0
        $region40: #{tpu_custom_call.1} parent=31 // pred_fallthru
          _
        %s213 = sadd.s32 %s24, %s25
        %s214 = smul.u32 %s213, 128
        %v215 = vlaneseq
        %v216 = vand.u32 %v215, 127
        %v217 = vstv %s214
        %v218 = vadd.s32 %v217, %v216
        %v219 = vld [vmem:[%s0] sm:$0xff]
        %220 = vset.pattern.permute.xlu0 0
        %221 = vperm.xlu0 %220, %v219
        %v222 = vpop.permute.xlu0 %221
        %vm223 = vcmp.ge.s32.totalorder %v218, %v222
        %v224 = vld [vmem:[%s1] sm:$0xff]
        %225 = vset.pattern.permute.xlu0 0
        %226 = vperm.xlu0 %225, %v224
        %v227 = vpop.permute.xlu0 %226
        %vm228 = vcmp.lt.s32.totalorder %v218, %v227
        %vm229 = vmand %vm223, %vm228
        %v230 = vsel %vm229, 1, 0
        %v231 = vcvt.s32.f32 %v230
        %v232 = vld [vmem:[%s205] sm:$0xff]
        %v233 = vld [vmem:[%s182] sm:$0xff]
        %v234 = vld [vmem:[%s182 + $0x8] sm:$0xff]
        %v235 = vld [vmem:[%s182 + $0x10] sm:$0xff]
        %v236 = vld [vmem:[%s182 + $0x18] sm:$0xff]
        %v237 = vld [vmem:[%s182 + $0x20] sm:$0xff]
        %v238 = vld [vmem:[%s182 + $0x28] sm:$0xff]
        %v239 = vld [vmem:[%s182 + $0x30] sm:$0xff]
        %v240 = vld [vmem:[%s182 + $0x38] sm:$0xff]
        %v241 = vld [vmem:[%s182 + $0x40] sm:$0xff]
        %v242 = vld [vmem:[%s182 + $0x48] sm:$0xff]
        %v243 = vld [vmem:[%s182 + $0x50] sm:$0xff]
        %v244 = vld [vmem:[%s182 + $0x58] sm:$0xff]
        %v245 = vld [vmem:[%s182 + $0x60] sm:$0xff]
        %v246 = vld [vmem:[%s182 + $0x68] sm:$0xff]
        %v247 = vld [vmem:[%s182 + $0x70] sm:$0xff]
        %v248 = vld [vmem:[%s182 + $0x78] sm:$0xff]
        %249 = vmatpush.msra.mxu0 %v248
        %250 = vmatpush.msra.mxu0 %v247
        %251 = vmatpush.msra.mxu0 %v246
        %252 = vmatpush.msra.mxu0 %v245
        %253 = vmatpush.msra.mxu0 %v244
        %254 = vmatpush.msra.mxu0 %v243
        %255 = vmatpush.msra.mxu0 %v242
        %256 = vmatpush.msra.mxu0 %v241
        %257 = vmatpush.msra.mxu0 %v240
        %258 = vmatpush.msra.mxu0 %v239
        %259 = vmatpush.msra.mxu0 %v238
        %260 = vmatpush.msra.mxu0 %v237
        %261 = vmatpush.msra.mxu0 %v236
        %262 = vmatpush.msra.mxu0 %v235
        %263 = vmatpush.msra.mxu0 %v234
        %264 = vmatpush.msra.mxu0 %v233
        %265 = vmatmul.f32.gmra.mxu0 %v231
        %v266 = vpop.f32.mrf.mxu0
        %v267 = vadd.f32 0.0, %v266
        %268 = vdwg.mxu0
        %v269 = vadd.f32 %v232, %v267
        %270 = vst [vmem:[%s205] sm:$0xff] %v269
        %s271 = sand.u32 %s110, 1
        %s272 = scalar_lea.sflag [#allocation4], %s271
        %s273 = sand.u32 %s110, 1
        %s274 = smul.addr %s273, 8
        %s275 = scalar_lea.vmem [#allocation5], %s274
        // Predicated region
        $region41: #{tpu_custom_call.1} parent=31 // pred_check
          %p276 = pneg %p120
        $region42: #{tpu_custom_call.1} parent=31 // pred_check_branch
          %278 = sbr.rel (%p276) target = $region44
        $region43: #{tpu_custom_call.1} parent=31 // pred_region
          %280 = vsyncadd %s272, 0
          %s281 = smul.addr %s24, 8
          %s282 = scalar_lea.hbm %s3, %s281
          %s284 = sshll.u32 %s275, 4
          %s285 = int_to_ptr.vmem [resolvable:$true] %s284
          %s286 = sshll.u32 %s282, 4
          %s287 = int_to_ptr.hbm [resolvable:$true] %s286
          %289 = dma.vmem_to_hbm [thread:$0]  %s285, 128, %s287, %s272
        $region44: #{tpu_custom_call.1} parent=31 // pred_fallthru
          _
      $region32: #{tpu_custom_call.1} parent=5 // pred_fallthru
        _
      %p290 = scmp.le.s32.totalorder 2, %s15
      // Predicated region
      $region45: #{tpu_custom_call.1} parent=5 // pred_check
        %p291 = pneg %p290
      $region46: #{tpu_custom_call.1} parent=5 // pred_check_branch
        %293 = sbr.rel (%p291) target = $region48
      $region47: #{tpu_custom_call.1} parent=5 // pred_region
        %s294 = ssub.s32 %s15, 2
        // Predicated region
        $region49: #{tpu_custom_call.1} parent=47 // pred_check
          %p295 = pneg %p126
        $region50: #{tpu_custom_call.1} parent=47 // pred_check_branch
          %297 = sbr.rel (%p295) target = $region52
        $region51: #{tpu_custom_call.1} parent=47 // pred_region
          %s298 = sand.u32 %s111, 1
          %s299 = scalar_lea.sflag [#allocation4], %s298
          %s300 = sand.u32 %s111, 1
          %s301 = smul.addr %s300, 8
          %s302 = scalar_lea.vmem [#allocation5], %s301
          %304 = dma.done %s299, 128
        $region52: #{tpu_custom_call.1} parent=47 // pred_fallthru
          _
      $region48: #{tpu_custom_call.1} parent=5 // pred_fallthru
        _
    $region6: #{tpu_custom_call.1} parent=1 // loop_footer
      %s19 = sadd.s32 1, %s15
    $region7: #{tpu_custom_call.1} parent=1 // loop_footer_branch
      %14 = sbr.rel target = $region3
    $region8: #{tpu_custom_call.1} parent=1 // loop_exit
      _
    %305 = vsyncpa [#allocation3], 1
    %s306 = scalar_lea.sflag [#allocation3], 1
    %307 = vsyncpa %s306, 1
    %308 = vsyncpa [#allocation4], 1
    %s309 = scalar_lea.sflag [#allocation4], 1
    %310 = vsyncpa %s309, 1

</llo_original>
